<compile_context>
chip_gen: v5e
topology: v5e:2x2
jax: 0.10.0
libtpu: 0.0.40
codegen_flags: <defaults>
</compile_context>

<pallas_src>
import functools

import jax
import jax.numpy as jnp
from jax import lax
from jax.experimental import pallas as pl
from jax.experimental.pallas import tpu as pltpu


def _bernoulli_logits_kernel(x_ref, w_ref, b_ref, logits_ref):
    # x_ref: (TB, K); w_ref: (N, K) (PyTorch layout); b_ref: (1, N); logits_ref: (TB, N).
    x = x_ref[...]
    w = w_ref[...]
    # Contract the shared K axis directly on the MXU: (TB,K) x (N,K) -> (TB,N).
    logits = lax.dot_general(
        x, w,
        dimension_numbers=(((1,), (1,)), ((), ())),
        preferred_element_type=jnp.float32,
    )
    logits = logits + b_ref[...]  # f32 bias add (no bf16 VPU path needed on v5e)
    logits_ref[...] = logits.astype(logits_ref.dtype)


@functools.partial(jax.jit, static_argnames=("batch_tile",))
def bernoulli_head_logits(x, weight, bias, *, batch_tile=4096):
    """Logits of torch.distributions.Bernoulli(logits=Linear(x)).

    x:      (B, num_inputs)
    weight: (num_outputs, num_inputs)   (PyTorch nn.Linear layout, NOT transposed)
    bias:   (num_outputs,)
    Returns logits: (B, num_outputs) float32.  probs = sigmoid(logits) is left to
    the caller (recomputable; avoids a second narrow output stream).

    batch_tile: rows per grid step on the large-batch path.  4096 is safe on all
    generations (~8 MiB double-buffered with lane padding); 8192 is fine on
    v6e/v7x (32 MiB scoped default).
    """
    assert batch_tile % 8 == 0, "batch_tile must be a multiple of 8 (sublane tiling)"
    B, num_inputs = x.shape
    num_outputs, k_w = weight.shape
    assert k_w == num_inputs
    b2 = bias.reshape(1, num_outputs).astype(jnp.float32)
    out_shape = jax.ShapeDtypeStruct((B, num_outputs), jnp.float32)

    # Small-batch path: single invocation, no grid, whole arrays in VMEM.
    # Only taken when B <= batch_tile, so VMEM usage is bounded by construction.
    if B <= batch_tile:
        return pl.pallas_call(
            _bernoulli_logits_kernel,
            out_shape=out_shape,
            in_specs=[
                pl.BlockSpec(memory_space=pltpu.MemorySpace.VMEM),
                pl.BlockSpec(memory_space=pltpu.MemorySpace.VMEM),
                pl.BlockSpec(memory_space=pltpu.MemorySpace.VMEM),
            ],
            out_specs=pl.BlockSpec(memory_space=pltpu.MemorySpace.VMEM),
            compiler_params=pltpu.CompilerParams(
                vmem_limit_bytes=32 << 20,
            ),
        )(x, weight, b2)

    # Large-batch path: pipelined batch tiling with a ragged last tile
    # (pl.cdiv grid).  Rows past B are undefined on read and dropped on write;
    # the row-wise matmul makes that harmless.  Batch axis is "parallel" so the
    # grid steps can be sharded across TensorCores where supported.
    grid = (pl.cdiv(B, batch_tile),)
    return pl.pallas_call(
        _bernoulli_logits_kernel,
        out_shape=out_shape,
        grid=grid,
        in_specs=[
            pl.BlockSpec((batch_tile, num_inputs), lambda i: (i, 0)),
            pl.BlockSpec((num_outputs, num_inputs), lambda i: (0, 0)),
            pl.BlockSpec((1, num_outputs), lambda i: (0, 0)),
        ],
        out_specs=pl.BlockSpec((batch_tile, num_outputs), lambda i: (i, 0)),
        compiler_params=pltpu.CompilerParams(
            dimension_semantics=("parallel",),
            vmem_limit_bytes=32 << 20,
        ),
    )(x, weight, b2)


def _reference_logits(x, weight, bias):
    return x @ weight.T + bias


if __name__ == "__main__":
    key = jax.random.PRNGKey(0)
    k_x, k_w, k_x2 = jax.random.split(key, 3)

    batch = 8
    num_inputs = 32
    num_outputs = 16

    # Deterministic parameter init mirroring the PyTorch module:
    # orthogonal weight (gain=1), zero bias.
    weight = jax.nn.initializers.orthogonal(scale=1.0)(
        k_w, (num_outputs, num_inputs), jnp.float32
    )
    bias = jnp.zeros((num_outputs,), jnp.float32)

    # Small-shape path (no grid).
    x = jax.random.normal(k_x, (batch, num_inputs), jnp.float32)
    logits = bernoulli_head_logits(x, weight, bias)
    jax.block_until_ready(logits)
    ref = _reference_logits(x, weight, bias)
    assert jnp.allclose(logits, ref, atol=1e-5, rtol=1e-5)

    # Exercise the pipelined path, including a ragged (indivisible) last tile.
    big_b = 640  # 640 = 2 * 256 + 128  ->  grid of 3 with a partial final block
    x_big = jax.random.normal(k_x2, (big_b, num_inputs), jnp.float32)
    logits_big = bernoulli_head_logits(x_big, weight, bias, batch_tile=256)
    jax.block_until_ready(logits_big)
    ref_big = _reference_logits(x_big, weight, bias)
    assert jnp.allclose(logits_big, ref_big, atol=1e-5, rtol=1e-5)

    # probs = sigmoid(logits) is the Bernoulli(logits=.) parameterization; it is
    # deliberately recomputed by the consumer rather than stored by the kernel.
    probs = jax.nn.sigmoid(logits)
    assert jnp.allclose(probs, jax.nn.sigmoid(ref), atol=1e-5, rtol=1e-5)

    # TODO(synk): sampling from the Bernoulli distribution (dist.sample()) is not
    # part of the module's forward pass and is left to the caller.
    print("KERNEL_OK")
</pallas_src>

<mosaic_0001>
module attributes {stable_mosaic.version = 11 : i64} {
  func.func @_bernoulli_logits_kernel(%arg0: memref<8x32xf32, #tpu.memory_space<vmem>>, %arg1: memref<16x32xf32, #tpu.memory_space<vmem>>, %arg2: memref<1x16xf32, #tpu.memory_space<vmem>>, %arg3: memref<8x16xf32, #tpu.memory_space<vmem>>) attributes {dimension_semantics = [], scalar_prefetch = 0 : i64, scratch_operands = 0 : i64, tpu.core_type = #tpu.core_type<tc>} {
    %c0 = arith.constant 0 : index
    %c0_0 = arith.constant 0 : index
    %0 = vector.load %arg0[%c0, %c0_0] : memref<8x32xf32, #tpu.memory_space<vmem>>, vector<8x32xf32>
    %c0_1 = arith.constant 0 : index
    %c0_2 = arith.constant 0 : index
    %1 = vector.load %arg1[%c0_1, %c0_2] : memref<16x32xf32, #tpu.memory_space<vmem>>, vector<16x32xf32>
    %cst = arith.constant dense<0.000000e+00> : vector<8x16xf32>
    %2 = tpu.matmul %0, %1, %cst {dimension_numbers = #tpu.dot_dimension_numbers<[1], [1], [0], [0], [0, 0, 1, 0], [], []>} : vector<8x32xf32>, vector<16x32xf32>, vector<8x16xf32> -> vector<8x16xf32>
    %c0_3 = arith.constant 0 : index
    %c0_4 = arith.constant 0 : index
    %3 = vector.load %arg2[%c0_3, %c0_4] : memref<1x16xf32, #tpu.memory_space<vmem>>, vector<1x16xf32>
    %4 = vector.broadcast %3 : vector<1x16xf32> to vector<8x16xf32>
    %5 = arith.addf %2, %4 : vector<8x16xf32>
    %c0_5 = arith.constant 0 : index
    %c0_6 = arith.constant 0 : index
    %6 = vector.load %arg3[%c0_5, %c0_6] : memref<8x16xf32, #tpu.memory_space<vmem>>, vector<8x16xf32>
    tpu.vector_store %arg3[%c0_5, %c0_6], %5 {strides = array<i32>} : memref<8x16xf32, #tpu.memory_space<vmem>>, vector<8x16xf32>,
    return
  }
}

</mosaic_0001>

<llo_original>
// kernel: bernoulli_head_logits.1
$region0: #{bernoulli_head_logits.1}
  #allocation0 [shape = 'u32[]', space=smem, size = 0x4, offset = 0x4, fixed_abs, tag = 'smem constant byte address 0x4 - core index']
  #allocation1 [shape = 'u32[72,128]{1,0:T(1,128)}', space=vmem, size = 0x9000, scoped, tag = 'internal scratch']
  %s0 = inlined_call_operand.hbm [shape: f32[8,32], index: 0, kind: input, shape index: {}]
  %s1 = inlined_call_operand.hbm [shape: f32[16,32], index: 1, kind: input, shape index: {}]
  %s2 = inlined_call_operand.vmem [shape: f32[1,16], index: 2, kind: input, shape index: {}]
  %s3 = inlined_call_operand.hbm [shape: f32[8,16], index: 3, kind: output, shape index: {}]
  %s4 = sld [smem:[#allocation0]]
  $region30: #{bernoulli_head_logits.1} parent=0
    _
  %s6 = ssub.s32 1, %s4
  %s7 = scalar_select 0, %s6, %s4
  $region1: #{bernoulli_head_logits.1} parent=0
    #allocation2 [shape = 'u8[4096]{0}', space=vmem, size = 0x1000, scoped, tag = 'input window, operand 0, single buffered']
    #allocation3 [shape = 's32[1]{0}', space=sflag, size = 0x4, scoped, tag = 'scoped memory for bernoulli_head_logits.1']
    #allocation4 [shape = 's32[1]{0}', space=sflag, size = 0x4, scoped, tag = 'scoped memory for bernoulli_head_logits.1']
    #allocation5 [shape = 'u8[8192]{0}', space=vmem, size = 0x2000, scoped, tag = 'input window, operand 1, single buffered']
    #allocation6 [shape = 's32[1]{0}', space=sflag, size = 0x4, scoped, tag = 'scoped memory for bernoulli_head_logits.1']
    #allocation7 [shape = 'u8[4096]{0}', space=vmem, size = 0x1000, scoped, tag = 'output window, operand 0, single buffered']
    %8 = vsyncpa [#allocation3], 0
    %9 = vsyncpa [#allocation6], 0
    %10 = vsyncpa [#allocation4], 0
    // Predicated region
    $region2: #{bernoulli_head_logits.1} parent=1 // pred_check
      _
    $region3: #{bernoulli_head_logits.1} parent=1 // pred_check_branch
      %12 = sbr.rel (0) target = $region5
    $region4: #{bernoulli_head_logits.1} parent=1 // pred_region
      %14 = vsyncadd [#allocation3], 0
      %s16 = sshll.u32 %s0, 4
      %s17 = int_to_ptr.hbm [resolvable:$true] %s16
      %s18 = sshll.u32 [#allocation2], 4
      %s19 = int_to_ptr.vmem [resolvable:$true] %s18
      %21 = dma.hbm_to_vmem [thread:$0]  %s17, 128, %s19, [#allocation3]
    $region5: #{bernoulli_head_logits.1} parent=1 // pred_fallthru
      _
    // Predicated region
    $region6: #{bernoulli_head_logits.1} parent=1 // pred_check
      _
    $region7: #{bernoulli_head_logits.1} parent=1 // pred_check_branch
      %23 = sbr.rel (0) target = $region9
    $region8: #{bernoulli_head_logits.1} parent=1 // pred_region
      %25 = vsyncadd [#allocation6], 0
      %s26 = sshll.u32 %s1, 4
      %s27 = int_to_ptr.hbm [resolvable:$true] %s26
      %s28 = sshll.u32 [#allocation5], 4
      %s29 = int_to_ptr.vmem [resolvable:$true] %s28
      %34 = dma.hbm_to_vmem [thread:$0]  %s27, 256, %s29, [#allocation6], 128, 128, 8
    $region9: #{bernoulli_head_logits.1} parent=1 // pred_fallthru
      _
    // Predicated region
    $region10: #{bernoulli_head_logits.1} parent=1 // pred_check
      _
    $region11: #{bernoulli_head_logits.1} parent=1 // pred_check_branch
      %36 = sbr.rel (0) target = $region13
    $region12: #{bernoulli_head_logits.1} parent=1 // pred_region
      _
    $region13: #{bernoulli_head_logits.1} parent=1 // pred_fallthru
      _
    // Predicated region
    $region14: #{bernoulli_head_logits.1} parent=1 // pred_check
      _
    $region15: #{bernoulli_head_logits.1} parent=1 // pred_check_branch
      %38 = sbr.rel (0) target = $region17
    $region16: #{bernoulli_head_logits.1} parent=1 // pred_region
      %40 = dma.done [#allocation3], 128
    $region17: #{bernoulli_head_logits.1} parent=1 // pred_fallthru
      _
    // Predicated region
    $region18: #{bernoulli_head_logits.1} parent=1 // pred_check
      _
    $region19: #{bernoulli_head_logits.1} parent=1 // pred_check_branch
      %42 = sbr.rel (0) target = $region21
    $region20: #{bernoulli_head_logits.1} parent=1 // pred_region
      %44 = dma.done [#allocation6], 256
    $region21: #{bernoulli_head_logits.1} parent=1 // pred_fallthru
      _
    %v45 = vld [vmem:[#allocation2] sm:$0xff]
    %v46 = vld [vmem:[#allocation5] sm:$0xff]
    %v47 = vld [vmem:[#allocation5 + $0x8] sm:$0xff]
    %v48 = vld [vmem:[%s2] sm:$0x1]
    %v50 = vperm.slane %v48, 0
    %vm52 = vcmask 261120
    %v54 = vsel %vm52, %v45, 0
    %v57 = vsel %vm52, %v46, 0
    %v60 = vsel %vm52, %v47, 0
    %62 = vmatpush.xpose.msra.mxu0 0.0
    %63 = vmatpush.xpose.msra.mxu0 0.0
    %64 = vmatpush.xpose.msra.mxu0 0.0
    %65 = vmatpush.xpose.msra.mxu0 0.0
    %66 = vmatpush.xpose.msra.mxu0 0.0
    %67 = vmatpush.xpose.msra.mxu0 0.0
    %68 = vmatpush.xpose.msra.mxu0 0.0
    %69 = vmatpush.xpose.msra.mxu0 0.0
    %70 = vmatpush.xpose.msra.mxu0 0.0
    %71 = vmatpush.xpose.msra.mxu0 0.0
    %72 = vmatpush.xpose.msra.mxu0 0.0
    %73 = vmatpush.xpose.msra.mxu0 0.0
    %74 = vmatpush.xpose.msra.mxu0 0.0
    %75 = vmatpush.xpose.msra.mxu0 0.0
    %76 = vmatpush.xpose.msra.mxu0 %v60
    %77 = vmatpush.xpose.msra.mxu0 %v57
    %78 = vmatmul.f32.gmra.mxu0 %v54
    %v79 = vpop.f32.mrf.mxu0
    %v80 = vadd.f32 %v50, %v79
    %81 = vdwg.mxu0
    %vm82 = vcmask 130048
    %83 = vst.msk [vmem:[#allocation7] sm:$0xff] %vm82, %v80
    // Predicated region
    $region22: #{bernoulli_head_logits.1} parent=1 // pred_check
      _
    $region23: #{bernoulli_head_logits.1} parent=1 // pred_check_branch
      %85 = sbr.rel (0) target = $region25
    $region24: #{bernoulli_head_logits.1} parent=1 // pred_region
      %87 = vsyncadd [#allocation4], 0
      %s89 = sshll.u32 [#allocation7], 4
      %s90 = int_to_ptr.vmem [resolvable:$true] %s89
      %s91 = sshll.u32 %s3, 4
      %s92 = int_to_ptr.hbm [resolvable:$true] %s91
      %94 = dma.vmem_to_hbm [thread:$0]  %s90, 128, %s92, [#allocation4]
    $region25: #{bernoulli_head_logits.1} parent=1 // pred_fallthru
      _
    // Predicated region
    $region26: #{bernoulli_head_logits.1} parent=1 // pred_check
      _
    $region27: #{bernoulli_head_logits.1} parent=1 // pred_check_branch
      %96 = sbr.rel (0) target = $region29
    $region28: #{bernoulli_head_logits.1} parent=1 // pred_region
      %98 = dma.done [#allocation4], 128
    $region29: #{bernoulli_head_logits.1} parent=1 // pred_fallthru
      _
    %99 = vsyncpa [#allocation3], 1
    %100 = vsyncpa [#allocation6], 1
    %101 = vsyncpa [#allocation4], 1

</llo_original>
